<compile_context>
chip_gen: v7x
topology: tpu7x:2x2x1
jax: 0.10.0
libtpu: 0.0.40
codegen_flags: <defaults>
</compile_context>

<pallas_src>
import jax
import jax.numpy as jnp
import numpy as np
from jax.experimental import pallas as pl
from jax.experimental.pallas import tpu as pltpu


# ----------------------------------------------------------------------------
# Kernel 1: fused-head projection + attention logits
#   fs  = x @ W_hf            [N, H*F]
#   elr = fs @ A              [N, 2H]   (cols 0:H -> el, cols H:2H -> er)
# ----------------------------------------------------------------------------
def proj_kernel(x_ref, w_ref, a_ref, fs_ref, elr_ref):
    fs = jnp.dot(x_ref[...], w_ref[...], preferred_element_type=jnp.float32)
    fs_ref[...] = fs
    elr_ref[...] = jnp.dot(fs, a_ref[...], preferred_element_type=jnp.float32)


# ----------------------------------------------------------------------------
# Kernel 2: masked edge-softmax + aggregation, tiled over destination nodes.
# ----------------------------------------------------------------------------
def make_attn_kernel(num_heads: int, out_feats: int, negative_slope: float):
    H, F = num_heads, out_feats

    def attn_kernel(adj_ref, er_ref, fs_ref, elt_ref, out_ref):
        adj = adj_ref[...]                     # [TILE_DST, N_src]
        neg_bias = (adj - 1.0) * 1e30          # 0 on edges, -1e30 off edges
        er = er_ref[...]                       # [TILE_DST, H]
        fs = fs_ref[...]                       # [N_src, H*F]

        cols = []
        for h in range(H):                     # H is small; temporaries per head
            # e[v, u] = leaky_relu(el[u] + er[v]) for this head.
            e = er[:, h:h + 1] + elt_ref[h:h + 1, :]        # [TILE_DST, N_src]
            e = jnp.where(e > 0, e, negative_slope * e)
            e = e + neg_bias                                 # mask non-edges
            m = jnp.max(e, axis=-1, keepdims=True)
            p = jnp.exp(e - m) * adj                         # exact zero off-edge
            denom = jnp.maximum(jnp.sum(p, axis=-1, keepdims=True), 1e-20)
            # Exact reciprocal of the [TILE_DST, 1] denominator: the approx
            # EUP vrcp (~1e-3 rel err) was the source of the tolerance misses,
            # and an exact recip on a [TILE_DST, 1] tensor costs nothing.
            alpha = p * (1.0 / denom)
            # rst[v] = sum_u alpha[v,u] * feat[u]  (per-head MXU matmul)
            cols.append(jnp.dot(alpha, fs[:, h * F:(h + 1) * F],
                                preferred_element_type=jnp.float32))
        # Single lane-dense store [TILE_DST, H*F].
        out_ref[...] = jnp.concatenate(cols, axis=-1)

    return attn_kernel


def _pick_tile(n: int) -> int:
    for cand in (512, 256, 128, 64, 32, 16, 8):
        if cand <= n and n % cand == 0:
            return cand
    return n  # full-array block is always legal


def gat_conv(x, w, attn_l, attn_r, adj, *, negative_slope=0.2, tile_dst=None):
    """x: [N, Din], w: [H, Din, F], attn_l/attn_r: [H, F], adj: [N, N] -> [N, H, F]."""
    H, Din, F = w.shape
    N = x.shape[0]
    HF = H * F

    # Fused per-head weight slab: w_hf[d, h*F + f] = w[h, d, f].
    w_hf = jnp.transpose(w, (1, 0, 2)).reshape(Din, HF)

    # Block-diagonal attention matrix A [H*F, 2H]:
    #   (fs @ A)[:, :H]  == el,   (fs @ A)[:, H:] == er
    eye_h = jnp.eye(H, dtype=jnp.float32)
    a_l = (attn_l[:, :, None] * eye_h[:, None, :]).reshape(HF, H)
    a_r = (attn_r[:, :, None] * eye_h[:, None, :]).reshape(HF, H)
    a_mat = jnp.concatenate([a_l, a_r], axis=1)            # [HF, 2H]

    # --- projection + logits kernel (single invocation, everything fits VMEM) ---
    fs, elr = pl.pallas_call(
        proj_kernel,
        out_shape=(jax.ShapeDtypeStruct((N, HF), jnp.float32),
                   jax.ShapeDtypeStruct((N, 2 * H), jnp.float32)),
        in_specs=[
            pl.BlockSpec(memory_space=pltpu.MemorySpace.VMEM),  # x
            pl.BlockSpec(memory_space=pltpu.MemorySpace.VMEM),  # w_hf
            pl.BlockSpec(memory_space=pltpu.MemorySpace.VMEM),  # a_mat
        ],
        out_specs=(pl.BlockSpec(memory_space=pltpu.MemorySpace.VMEM),
                   pl.BlockSpec(memory_space=pltpu.MemorySpace.VMEM)),
    )(x, w_hf, a_mat)

    el_t = jnp.transpose(elr[:, :H])   # [H, N]  (row-broadcast layout for u axis)
    er = elr[:, H:]                    # [N, H]

    # --- attention/aggregation kernel, gridded over destination-node tiles ---
    if tile_dst is None:
        tile_dst = _pick_tile(N)
    assert tile_dst == N or (N % tile_dst == 0 and tile_dst % 8 == 0)
    grid = (N // tile_dst,)

    attn_kernel = make_attn_kernel(H, F, negative_slope)
    out_flat = pl.pallas_call(
        attn_kernel,
        out_shape=jax.ShapeDtypeStruct((N, HF), jnp.float32),
        grid=grid,
        in_specs=[
            pl.BlockSpec((tile_dst, N), lambda i: (i, 0)),   # adj tile
            pl.BlockSpec((tile_dst, H), lambda i: (i, 0)),   # er tile
            pl.BlockSpec((N, HF), lambda i: (0, 0)),         # fs (resident)
            pl.BlockSpec((H, N), lambda i: (0, 0)),          # el^T (resident)
        ],
        out_specs=pl.BlockSpec((tile_dst, HF), lambda i: (i, 0)),
        compiler_params=pltpu.CompilerParams(
            dimension_semantics=("parallel",)),
    )(adj, er, fs, el_t)

    # PyTorch result layout: [N, H, F] (free reshape, columns are head-major).
    return out_flat.reshape(N, H, F)


# ----------------------------------------------------------------------------
# Pure-JAX reference (mirrors the PyTorch forward).
# ----------------------------------------------------------------------------
def reference(x, w, attn_l, attn_r, adj, negative_slope=0.2):
    feat = jnp.einsum("nd,hdf->nhf", x, w)                     # [N, H, F]
    el = jnp.sum(feat * attn_l[None], axis=-1)                 # [N, H]
    er = jnp.sum(feat * attn_r[None], axis=-1)                 # [N, H]
    e = er[:, None, :] + el[None, :, :]                        # [Ndst, Nsrc, H]
    e = jnp.where(e > 0, e, negative_slope * e)
    e = jnp.where(adj[:, :, None] > 0, e, -1e30)
    m = jnp.max(e, axis=1, keepdims=True)
    p = jnp.exp(e - m) * adj[:, :, None]
    denom = jnp.maximum(jnp.sum(p, axis=1, keepdims=True), 1e-20)
    alpha = p / denom                                          # [Ndst, Nsrc, H]
    return jnp.einsum("vuh,uhf->vhf", alpha, feat)


if __name__ == "__main__":
    N, Din, F, H = 64, 32, 16, 4
    negative_slope = 0.2

    key = jax.random.PRNGKey(0)
    kx, kw, kl, kr, ka = jax.random.split(key, 5)

    # Deterministic "xavier normal"-style init (gain for relu = sqrt(2)).
    gain = float(np.sqrt(2.0))
    std_w = gain * np.sqrt(2.0 / (Din + H * F))
    std_a = gain * np.sqrt(2.0 / (1 * H + F))

    x = jax.random.normal(kx, (N, Din), dtype=jnp.float32)
    w = std_w * jax.random.normal(kw, (H, Din, F), dtype=jnp.float32)
    attn_l = std_a * jax.random.normal(kl, (H, F), dtype=jnp.float32)
    attn_r = std_a * jax.random.normal(kr, (H, F), dtype=jnp.float32)

    # Random directed graph with self-loops (adj[v, u] = 1 iff edge u -> v).
    adj = (jax.random.uniform(ka, (N, N)) < 0.2).astype(jnp.float32)
    adj = jnp.maximum(adj, jnp.eye(N, dtype=jnp.float32))

    out = gat_conv(x, w, attn_l, attn_r, adj,
                   negative_slope=negative_slope, tile_dst=16)
    out = jax.block_until_ready(out)

    ref = reference(x, w, attn_l, attn_r, adj, negative_slope)
    np.testing.assert_allclose(np.asarray(out), np.asarray(ref),
                               rtol=2e-3, atol=2e-3)

    print("KERNEL_OK")
</pallas_src>

<mosaic_0001>
module attributes {stable_mosaic.version = 11 : i64} {
  func.func @proj_kernel(%arg0: memref<64x32xf32, #tpu.memory_space<vmem>>, %arg1: memref<32x64xf32, #tpu.memory_space<vmem>>, %arg2: memref<64x8xf32, #tpu.memory_space<vmem>>, %arg3: memref<64x64xf32, #tpu.memory_space<vmem>>, %arg4: memref<64x8xf32, #tpu.memory_space<vmem>>) attributes {dimension_semantics = [], scalar_prefetch = 0 : i64, scratch_operands = 0 : i64, tpu.core_type = #tpu.core_type<tc>} {
    %c0 = arith.constant 0 : index
    %c0_0 = arith.constant 0 : index
    %0 = vector.load %arg0[%c0, %c0_0] : memref<64x32xf32, #tpu.memory_space<vmem>>, vector<64x32xf32>
    %c0_1 = arith.constant 0 : index
    %c0_2 = arith.constant 0 : index
    %1 = vector.load %arg1[%c0_1, %c0_2] : memref<32x64xf32, #tpu.memory_space<vmem>>, vector<32x64xf32>
    %cst = arith.constant dense<0.000000e+00> : vector<64x64xf32>
    %2 = tpu.matmul %0, %1, %cst {dimension_numbers = #tpu.dot_dimension_numbers<[1], [0], [0], [1], [0, 0, 1, 1], [], []>} : vector<64x32xf32>, vector<32x64xf32>, vector<64x64xf32> -> vector<64x64xf32>
    %c0_3 = arith.constant 0 : index
    %c0_4 = arith.constant 0 : index
    %3 = vector.load %arg3[%c0_3, %c0_4] : memref<64x64xf32, #tpu.memory_space<vmem>>, vector<64x64xf32>
    tpu.vector_store %arg3[%c0_3, %c0_4], %2 {strides = array<i32>} : memref<64x64xf32, #tpu.memory_space<vmem>>, vector<64x64xf32>,
    %c0_5 = arith.constant 0 : index
    %c0_6 = arith.constant 0 : index
    %4 = vector.load %arg2[%c0_5, %c0_6] : memref<64x8xf32, #tpu.memory_space<vmem>>, vector<64x8xf32>
    %cst_7 = arith.constant dense<0.000000e+00> : vector<64x8xf32>
    %5 = tpu.matmul %2, %4, %cst_7 {dimension_numbers = #tpu.dot_dimension_numbers<[1], [0], [0], [1], [0, 0, 1, 1], [], []>} : vector<64x64xf32>, vector<64x8xf32>, vector<64x8xf32> -> vector<64x8xf32>
    %c0_8 = arith.constant 0 : index
    %c0_9 = arith.constant 0 : index
    %6 = vector.load %arg4[%c0_8, %c0_9] : memref<64x8xf32, #tpu.memory_space<vmem>>, vector<64x8xf32>
    tpu.vector_store %arg4[%c0_8, %c0_9], %5 {strides = array<i32>} : memref<64x8xf32, #tpu.memory_space<vmem>>, vector<64x8xf32>,
    return
  }
}

</mosaic_0001>

<llo_original>
// kernel: tpu_custom_call.1
$region0: #{tpu_custom_call.1}
  #allocation0 [shape = 'u32[]', space=smem, size = 0x4, offset = 0x4, fixed_abs, tag = 'smem constant byte address 0x4 - core index']
  #allocation1 [shape = 'u32[144,128]{1,0:T(1,128)}', space=vmem, size = 0x12000, scoped, tag = 'internal scratch']
  %s0 = inlined_call_operand.vmem [shape: f32[64,32], index: 0, kind: input, shape index: {}]
  %s1 = inlined_call_operand.vmem [shape: f32[32,64], index: 1, kind: input, shape index: {}]
  %s2 = inlined_call_operand.vmem [shape: f32[64,8], index: 2, kind: input, shape index: {}]
  %s3 = inlined_call_operand.hbm [shape: f32[64,64], index: 3, kind: output, shape index: {0}]
  %s4 = inlined_call_operand.vmem [shape: f32[64,8], index: 4, kind: output, shape index: {1}]
  %5 = xla_tuple %s3, %s4
  %s6 = sld [smem:[#allocation0]]
  $region30: #{tpu_custom_call.1} parent=0
    _
  %s8 = ssub.s32 1, %s6
  %s9 = scalar_select 0, %s8, %s6
  $region1: #{tpu_custom_call.1} parent=0
    #allocation2 [shape = 'u8[32768]{0}', space=vmem, size = 0x8000, scoped, tag = 'output window, operand 0, single buffered']
    #allocation3 [shape = 's32[1]{0}', space=sflag, size = 0x4, scoped, tag = 'scoped memory for tpu_custom_call.1']
    %10 = vsyncpa [#allocation3], 0
    // Predicated region
    $region2: #{tpu_custom_call.1} parent=1 // pred_check
      _
    $region3: #{tpu_custom_call.1} parent=1 // pred_check_branch
      %12 = sbr.rel (0) target = $region5
    $region4: #{tpu_custom_call.1} parent=1 // pred_region
      _
    $region5: #{tpu_custom_call.1} parent=1 // pred_fallthru
      _
    // Predicated region
    $region6: #{tpu_custom_call.1} parent=1 // pred_check
      _
    $region7: #{tpu_custom_call.1} parent=1 // pred_check_branch
      %14 = sbr.rel (0) target = $region9
    $region8: #{tpu_custom_call.1} parent=1 // pred_region
      _
    $region9: #{tpu_custom_call.1} parent=1 // pred_fallthru
      _
    // Predicated region
    $region10: #{tpu_custom_call.1} parent=1 // pred_check
      _
    $region11: #{tpu_custom_call.1} parent=1 // pred_check_branch
      %16 = sbr.rel (0) target = $region13
    $region12: #{tpu_custom_call.1} parent=1 // pred_region
      _
    $region13: #{tpu_custom_call.1} parent=1 // pred_fallthru
      _
    %v17 = vld [vmem:[%s0] sm:$0xff]
    %v18 = vld [vmem:[%s0 + $0x8] sm:$0xff]
    %v19 = vld [vmem:[%s0 + $0x10] sm:$0xff]
    %v20 = vld [vmem:[%s0 + $0x18] sm:$0xff]
    %v21 = vld [vmem:[%s0 + $0x20] sm:$0xff]
    %v22 = vld [vmem:[%s0 + $0x28] sm:$0xff]
    %v23 = vld [vmem:[%s0 + $0x30] sm:$0xff]
    %v24 = vld [vmem:[%s0 + $0x38] sm:$0xff]
    %v25 = vld [vmem:[%s1] sm:$0xff]
    %v26 = vld [vmem:[%s1 + $0x8] sm:$0xff]
    %v27 = vld [vmem:[%s1 + $0x10] sm:$0xff]
    %v28 = vld [vmem:[%s1 + $0x18] sm:$0xff]
    %vm29 = vcmask 261120
    %v31 = vsel %vm29, %v17, 0
    %v34 = vsel %vm29, %v18, 0
    %v37 = vsel %vm29, %v19, 0
    %v40 = vsel %vm29, %v20, 0
    %v43 = vsel %vm29, %v21, 0
    %v46 = vsel %vm29, %v22, 0
    %v49 = vsel %vm29, %v23, 0
    %v52 = vsel %vm29, %v24, 0
    %54 = vmatprep.subr.mxu0 0.0
    %55 = vmatpush1.msra.mxu0 %v25
    %56 = vmatprep.subr.mxu0 0.0
    %57 = vmatpush1.msra.mxu0 %v26
    %58 = vmatprep.subr.mxu0 0.0
    %59 = vmatpush1.msra.mxu0 %v27
    %60 = vmatprep.subr.mxu0 0.0
    %61 = vmatpush1.msra.mxu0 %v28
    %62 = vmatprep.subr.mxu0 0.0
    %63 = vmatpush1.msra.mxu0 0.0
    %64 = vmatprep.subr.mxu0 0.0
    %65 = vmatpush1.msra.mxu0 0.0
    %66 = vmatprep.subr.mxu0 0.0
    %67 = vmatpush1.msra.mxu0 0.0
    %68 = vmatprep.subr.mxu0 0.0
    %69 = vmatpush1.msra.mxu0 0.0
    %70 = vmatprep.subr.mxu0 0.0
    %71 = vmatpush1.msra.mxu0 0.0
    %72 = vmatprep.subr.mxu0 0.0
    %73 = vmatpush1.msra.mxu0 0.0
    %74 = vmatprep.subr.mxu0 0.0
    %75 = vmatpush1.msra.mxu0 0.0
    %76 = vmatprep.subr.mxu0 0.0
    %77 = vmatpush1.msra.mxu0 0.0
    %78 = vmatprep.subr.mxu0 0.0
    %79 = vmatpush1.msra.mxu0 0.0
    %80 = vmatprep.subr.mxu0 0.0
    %81 = vmatpush1.msra.mxu0 0.0
    %82 = vmatprep.subr.mxu0 0.0
    %83 = vmatpush1.msra.mxu0 0.0
    %84 = vmatprep.subr.mxu0 0.0
    %85 = vmatpush1.msra.mxu0 0.0
    %86 = vmatprep.subr.mxu0 0.0
    %87 = vmatpush1.msra.mxu0 0.0
    %88 = vmatprep.subr.mxu0 0.0
    %89 = vmatpush1.msra.mxu0 0.0
    %90 = vmatprep.subr.mxu0 0.0
    %91 = vmatpush1.msra.mxu0 0.0
    %92 = vmatprep.subr.mxu0 0.0
    %93 = vmatpush1.msra.mxu0 0.0
    %94 = vmatprep.subr.mxu0 0.0
    %95 = vmatpush1.msra.mxu0 0.0
    %96 = vmatprep.subr.mxu0 0.0
    %97 = vmatpush1.msra.mxu0 0.0
    %98 = vmatprep.subr.mxu0 0.0
    %99 = vmatpush1.msra.mxu0 0.0
    %100 = vmatprep.subr.mxu0 0.0
    %101 = vmatpush1.msra.mxu0 0.0
    %102 = vmatprep.subr.mxu0 0.0
    %103 = vmatpush1.msra.mxu0 0.0
    %104 = vmatprep.subr.mxu0 0.0
    %105 = vmatpush1.msra.mxu0 0.0
    %106 = vmatprep.subr.mxu0 0.0
    %107 = vmatpush1.msra.mxu0 0.0
    %108 = vmatprep.subr.mxu0 0.0
    %109 = vmatpush1.msra.mxu0 0.0
    %110 = vmatprep.subr.mxu0 0.0
    %111 = vmatpush1.msra.mxu0 0.0
    %112 = vmatprep.subr.mxu0 0.0
    %113 = vmatpush1.msra.mxu0 0.0
    %114 = vmatprep.subr.mxu0 0.0
    %115 = vmatpush1.msra.mxu0 0.0
    %116 = vmatprep.subr.mxu0 0.0
    %117 = vmatpush1.msra.mxu0 0.0
    %118 = vmatprep.mubr.f32.mxu0 0.0
    %119 = vmatmul.mubr.f32.gmra.mrb[0].mxu0 %v31
    %v120 = vpop.f32.mrb[0].mxu0
    %v121 = vadd.f32 0.0, %v120
    %v122 = vpop.f32.mrb[0].mxu0
    %123 = vmatprep.mubr.f32.mxu0 0.0
    %124 = vmatmul.mubr.f32.gmra.mrb[0].mxu0 %v34
    %v125 = vpop.f32.mrb[0].mxu0
    %v126 = vadd.f32 0.0, %v125
    %v127 = vpop.f32.mrb[0].mxu0
    %128 = vmatprep.mubr.f32.mxu0 0.0
    %129 = vmatmul.mubr.f32.gmra.mrb[0].mxu0 %v37
    %v130 = vpop.f32.mrb[0].mxu0
    %v131 = vadd.f32 0.0, %v130
    %v132 = vpop.f32.mrb[0].mxu0
    %133 = vmatprep.mubr.f32.mxu0 0.0
    %134 = vmatmul.mubr.f32.gmra.mrb[0].mxu0 %v40
    %v135 = vpop.f32.mrb[0].mxu0
    %v136 = vadd.f32 0.0, %v135
    %v137 = vpop.f32.mrb[0].mxu0
    %138 = vmatprep.mubr.f32.mxu0 0.0
    %139 = vmatmul.mubr.f32.gmra.mrb[0].mxu0 %v43
    %v140 = vpop.f32.mrb[0].mxu0
    %v141 = vadd.f32 0.0, %v140
    %v142 = vpop.f32.mrb[0].mxu0
    %143 = vmatprep.mubr.f32.mxu0 0.0
    %144 = vmatmul.mubr.f32.gmra.mrb[0].mxu0 %v46
    %v145 = vpop.f32.mrb[0].mxu0
    %v146 = vadd.f32 0.0, %v145
    %v147 = vpop.f32.mrb[0].mxu0
    %148 = vmatprep.mubr.f32.mxu0 0.0
    %149 = vmatmul.mubr.f32.gmra.mrb[0].mxu0 %v49
    %v150 = vpop.f32.mrb[0].mxu0
    %v151 = vadd.f32 0.0, %v150
    %v152 = vpop.f32.mrb[0].mxu0
    %153 = vmatprep.mubr.f32.mxu0 0.0
    %154 = vmatmul.mubr.f32.gmra.mrb[0].mxu0 %v52
    %v155 = vpop.f32.mrb[0].mxu0
    %v156 = vadd.f32 0.0, %v155
    %v157 = vpop.f32.mrb[0].mxu0
    %158 = vdwg.mxu0
    %vm159 = vcmask 523264
    %160 = vst.msk [vmem:[#allocation2] sm:$0xff] %vm159, %v121
    %161 = vst.msk [vmem:[#allocation2 + $0x8] sm:$0xff] %vm159, %v126
    %162 = vst.msk [vmem:[#allocation2 + $0x10] sm:$0xff] %vm159, %v131
    %163 = vst.msk [vmem:[#allocation2 + $0x18] sm:$0xff] %vm159, %v136
    %164 = vst.msk [vmem:[#allocation2 + $0x20] sm:$0xff] %vm159, %v141
    %165 = vst.msk [vmem:[#allocation2 + $0x28] sm:$0xff] %vm159, %v146
    %166 = vst.msk [vmem:[#allocation2 + $0x30] sm:$0xff] %vm159, %v151
    %167 = vst.msk [vmem:[#allocation2 + $0x38] sm:$0xff] %vm159, %v156
    %v168 = vld [vmem:[%s2] sm:$0xff]
    %v169 = vld [vmem:[%s2 + $0x8] sm:$0xff]
    %v170 = vld [vmem:[%s2 + $0x10] sm:$0xff]
    %v171 = vld [vmem:[%s2 + $0x18] sm:$0xff]
    %v172 = vld [vmem:[%s2 + $0x20] sm:$0xff]
    %v173 = vld [vmem:[%s2 + $0x28] sm:$0xff]
    %v174 = vld [vmem:[%s2 + $0x30] sm:$0xff]
    %v175 = vld [vmem:[%s2 + $0x38] sm:$0xff]
    %v177 = vsel %vm159, %v121, 0
    %v180 = vsel %vm159, %v126, 0
    %v183 = vsel %vm159, %v131, 0
    %v186 = vsel %vm159, %v136, 0
    %v189 = vsel %vm159, %v141, 0
    %v192 = vsel %vm159, %v146, 0
    %v195 = vsel %vm159, %v151, 0
    %v198 = vsel %vm159, %v156, 0
    %200 = vmatprep.subr.mxu0 0.0
    %201 = vmatpush1.msra.mxu0 %v168
    %202 = vmatprep.subr.mxu0 0.0
    %203 = vmatpush1.msra.mxu0 %v169
    %204 = vmatprep.subr.mxu0 0.0
    %205 = vmatpush1.msra.mxu0 %v170
    %206 = vmatprep.subr.mxu0 0.0
    %207 = vmatpush1.msra.mxu0 %v171
    %208 = vmatprep.subr.mxu0 0.0
    %209 = vmatpush1.msra.mxu0 %v172
    %210 = vmatprep.subr.mxu0 0.0
    %211 = vmatpush1.msra.mxu0 %v173
    %212 = vmatprep.subr.mxu0 0.0
    %213 = vmatpush1.msra.mxu0 %v174
    %214 = vmatprep.subr.mxu0 0.0
    %215 = vmatpush1.msra.mxu0 %v175
    %216 = vmatprep.subr.mxu0 0.0
    %217 = vmatpush1.msra.mxu0 0.0
    %218 = vmatprep.subr.mxu0 0.0
    %219 = vmatpush1.msra.mxu0 0.0
    %220 = vmatprep.subr.mxu0 0.0
    %221 = vmatpush1.msra.mxu0 0.0
    %222 = vmatprep.subr.mxu0 0.0
    %223 = vmatpush1.msra.mxu0 0.0
    %224 = vmatprep.subr.mxu0 0.0
    %225 = vmatpush1.msra.mxu0 0.0
    %226 = vmatprep.subr.mxu0 0.0
    %227 = vmatpush1.msra.mxu0 0.0
    %228 = vmatprep.subr.mxu0 0.0
    %229 = vmatpush1.msra.mxu0 0.0
    %230 = vmatprep.subr.mxu0 0.0
    %231 = vmatpush1.msra.mxu0 0.0
    %232 = vmatprep.subr.mxu0 0.0
    %233 = vmatpush1.msra.mxu0 0.0
    %234 = vmatprep.subr.mxu0 0.0
    %235 = vmatpush1.msra.mxu0 0.0
    %236 = vmatprep.subr.mxu0 0.0
    %237 = vmatpush1.msra.mxu0 0.0
    %238 = vmatprep.subr.mxu0 0.0
    %239 = vmatpush1.msra.mxu0 0.0
    %240 = vmatprep.subr.mxu0 0.0
    %241 = vmatpush1.msra.mxu0 0.0
    %242 = vmatprep.subr.mxu0 0.0
    %243 = vmatpush1.msra.mxu0 0.0
    %244 = vmatprep.subr.mxu0 0.0
    %245 = vmatpush1.msra.mxu0 0.0
    %246 = vmatprep.subr.mxu0 0.0
    %247 = vmatpush1.msra.mxu0 0.0
    %248 = vmatprep.subr.mxu0 0.0
    %249 = vmatpush1.msra.mxu0 0.0
    %250 = vmatprep.subr.mxu0 0.0
    %251 = vmatpush1.msra.mxu0 0.0
    %252 = vmatprep.subr.mxu0 0.0
    %253 = vmatpush1.msra.mxu0 0.0
    %254 = vmatprep.subr.mxu0 0.0
    %255 = vmatpush1.msra.mxu0 0.0
    %256 = vmatprep.subr.mxu0 0.0
    %257 = vmatpush1.msra.mxu0 0.0
    %258 = vmatprep.subr.mxu0 0.0
    %259 = vmatpush1.msra.mxu0 0.0
    %260 = vmatprep.subr.mxu0 0.0
    %261 = vmatpush1.msra.mxu0 0.0
    %262 = vmatprep.subr.mxu0 0.0
    %263 = vmatpush1.msra.mxu0 0.0
    %264 = vmatprep.mubr.f32.mxu0 0.0
    %265 = vmatmul.mubr.f32.gmra.mrb[0].mxu0 %v177
    %v266 = vpop.f32.mrb[0].mxu0
    %v267 = vadd.f32 0.0, %v266
    %v268 = vpop.f32.mrb[0].mxu0
    %269 = vmatprep.mubr.f32.mxu0 0.0
    %270 = vmatmul.mubr.f32.gmra.mrb[0].mxu0 %v180
    %v271 = vpop.f32.mrb[0].mxu0
    %v272 = vadd.f32 0.0, %v271
    %v273 = vpop.f32.mrb[0].mxu0
    %274 = vmatprep.mubr.f32.mxu0 0.0
    %275 = vmatmul.mubr.f32.gmra.mrb[0].mxu0 %v183
    %v276 = vpop.f32.mrb[0].mxu0
    %v277 = vadd.f32 0.0, %v276
    %v278 = vpop.f32.mrb[0].mxu0
    %279 = vmatprep.mubr.f32.mxu0 0.0
    %280 = vmatmul.mubr.f32.gmra.mrb[0].mxu0 %v186
    %v281 = vpop.f32.mrb[0].mxu0
    %v282 = vadd.f32 0.0, %v281
    %v283 = vpop.f32.mrb[0].mxu0
    %284 = vmatprep.mubr.f32.mxu0 0.0
    %285 = vmatmul.mubr.f32.gmra.mrb[0].mxu0 %v189
    %v286 = vpop.f32.mrb[0].mxu0
    %v287 = vadd.f32 0.0, %v286
    %v288 = vpop.f32.mrb[0].mxu0
    %289 = vmatprep.mubr.f32.mxu0 0.0
    %290 = vmatmul.mubr.f32.gmra.mrb[0].mxu0 %v192
    %v291 = vpop.f32.mrb[0].mxu0
    %v292 = vadd.f32 0.0, %v291
    %v293 = vpop.f32.mrb[0].mxu0
    %294 = vmatprep.mubr.f32.mxu0 0.0
    %295 = vmatmul.mubr.f32.gmra.mrb[0].mxu0 %v195
    %v296 = vpop.f32.mrb[0].mxu0
    %v297 = vadd.f32 0.0, %v296
    %v298 = vpop.f32.mrb[0].mxu0
    %299 = vmatprep.mubr.f32.mxu0 0.0
    %300 = vmatmul.mubr.f32.gmra.mrb[0].mxu0 %v198
    %v301 = vpop.f32.mrb[0].mxu0
    %v302 = vadd.f32 0.0, %v301
    %v303 = vpop.f32.mrb[0].mxu0
    %304 = vdwg.mxu0
    %vm305 = vcmask 64512
    %306 = vst.msk [vmem:[%s4] sm:$0xff] %vm305, %v267
    %307 = vst.msk [vmem:[%s4 + $0x8] sm:$0xff] %vm305, %v272
    %308 = vst.msk [vmem:[%s4 + $0x10] sm:$0xff] %vm305, %v277
    %309 = vst.msk [vmem:[%s4 + $0x18] sm:$0xff] %vm305, %v282
    %310 = vst.msk [vmem:[%s4 + $0x20] sm:$0xff] %vm305, %v287
    %311 = vst.msk [vmem:[%s4 + $0x28] sm:$0xff] %vm305, %v292
    %312 = vst.msk [vmem:[%s4 + $0x30] sm:$0xff] %vm305, %v297
    %313 = vst.msk [vmem:[%s4 + $0x38] sm:$0xff] %vm305, %v302
    // Predicated region
    $region14: #{tpu_custom_call.1} parent=1 // pred_check
      _
    $region15: #{tpu_custom_call.1} parent=1 // pred_check_branch
      %315 = sbr.rel (0) target = $region17
    $region16: #{tpu_custom_call.1} parent=1 // pred_region
      %s317 = ssub.s32 1024, 1024
      %318 = vsyncadd [#allocation3], %s317
      %s319 = sshll.u32 [#allocation2], 4
      %s320 = int_to_ptr.vmem [resolvable:$true] %s319
      %325 = dma.vmem_to_hbm [thread:$0]  %s320, 1024, %s3, [#allocation3], 128, 128, 8
    $region17: #{tpu_custom_call.1} parent=1 // pred_fallthru
      _
    // Predicated region
    $region18: #{tpu_custom_call.1} parent=1 // pred_check
      _
    $region19: #{tpu_custom_call.1} parent=1 // pred_check_branch
      %327 = sbr.rel (0) target = $region21
    $region20: #{tpu_custom_call.1} parent=1 // pred_region
      _
    $region21: #{tpu_custom_call.1} parent=1 // pred_fallthru
      _
    // Predicated region
    $region22: #{tpu_custom_call.1} parent=1 // pred_check
      _
    $region23: #{tpu_custom_call.1} parent=1 // pred_check_branch
      %329 = sbr.rel (0) target = $region25
    $region24: #{tpu_custom_call.1} parent=1 // pred_region
      %330 = dma.done [#allocation3], 1024
    $region25: #{tpu_custom_call.1} parent=1 // pred_fallthru
      _
    // Predicated region
    $region26: #{tpu_custom_call.1} parent=1 // pred_check
      _
    $region27: #{tpu_custom_call.1} parent=1 // pred_check_branch
      %332 = sbr.rel (0) target = $region29
    $region28: #{tpu_custom_call.1} parent=1 // pred_region
      _
    $region29: #{tpu_custom_call.1} parent=1 // pred_fallthru
      _
    %333 = vsyncpa [#allocation3], 1

</llo_original>
